<compile_context>
chip_gen: v7x
topology: tpu7x:2x2x1
jax: 0.10.0
libtpu: 0.0.40
codegen_flags: <defaults>
</compile_context>

<pallas_src>
import functools

import jax
import jax.numpy as jnp
from jax.experimental import pallas as pl
from jax.experimental.pallas import tpu as pltpu


def _round_up(a, b):
    return (a + b - 1) // b * b


# --------------------------------------------------------------------------- #
# Kernel
# --------------------------------------------------------------------------- #
def highway_kernel(x_ref, w_ref, b_ref, o_ref, *, n_layers, d_pad):
    """x_ref: (tm, Dp) in-dtype, w_ref: (L, Dp, 2*Dp) bf16, b_ref: (L, 1, 2*Dp) f32."""
    x = x_ref[...].astype(jnp.float32)                # f32 residual stream
    # L is small for ELMo-style highways (1-2), so a static unroll is right.
    # TODO(synk): for n_layers >~ 8 or very large D, add an innermost
    # "arbitrary" layer grid axis (residual carried in VMEM scratch,
    # pl.when init/finalize) so only one layer's weight slice stays resident.
    for l in range(n_layers):
        # One fused GEMM per layer: [tm, Dp] @ [Dp, 2*Dp] -> [tm, 2*Dp],
        # bf16 operands, f32 accumulation on the MXU.
        z = jnp.dot(x.astype(jnp.bfloat16), w_ref[l],
                    preferred_element_type=jnp.float32) + b_ref[l]
        g = jax.nn.sigmoid(z[:, :d_pad])              # gate = sigmoid(T(x)) (EUP)
        h = jnp.maximum(z[:, d_pad:], 0.0)            # relu(H(x))           (VPU)
        x = x + g * (h - x)                           # == g*h + (1-g)*x, fewer VPU ops
    o_ref[...] = x.astype(o_ref.dtype)


# --------------------------------------------------------------------------- #
# Sizing helpers
# --------------------------------------------------------------------------- #
def _vmem_capacity_bytes():
    try:
        return int(pltpu.get_tpu_info().vmem_capacity_bytes)
    except Exception:
        return 64 * 2**20          # conservative fallback (v7x per-TC VMEM)


def _footprint_bytes(tm, d_pad, n_layers, io_itemsize):
    """Rough VMEM footprint (default pipeline double-buffers every operand)."""
    w_bytes = n_layers * d_pad * (2 * d_pad) * 2       # bf16 fused weights
    b_bytes = n_layers * 8 * (2 * d_pad) * 4           # bias (sublane-pads 1 -> 8)
    io_bytes = tm * d_pad * io_itemsize * 2            # x tile + out tile
    work_bytes = 4 * tm * (2 * d_pad) * 4              # f32 working set per layer
    return 2 * (w_bytes + b_bytes + io_bytes) + work_bytes


def _choose_tm(m, d_pad, n_layers, io_itemsize, vmem_budget):
    # Aim for >= ~4 grid steps (2 per v7x TensorCore) so megacore sharding and
    # DMA/compute overlap both kick in, while keeping tiles 128..1024 rows to
    # amortize the ~600-cycle per-grid-step overhead on v6e/v7x.
    tm = _round_up(max(pl.cdiv(m, 4), 1), 128)
    tm = max(128, min(tm, 1024))
    while tm > 128 and _footprint_bytes(tm, d_pad, n_layers, io_itemsize) > vmem_budget:
        tm -= 128
    return tm


# --------------------------------------------------------------------------- #
# One-time parameter preparation (hoisted out of the per-call path)
# --------------------------------------------------------------------------- #
def prepare_highway_params(wt, bt, wh, bh):
    """Fuse the per-layer T/H weights into one stacked GEMM operand — ONCE.

    Call at model-init time and reuse across forward calls so the fused weight
    is not rebuilt (read + rewritten in HBM) on every invocation.

    wt, wh: [L, D, D] stored so the layer computes x @ wt (i.e. PyTorch W.T).
    bt, bh: [L, D].
    Returns (w_fused[L, Dp, 2*Dp] bf16, b_fused[L, 1, 2*Dp] f32), Dp = round_up(D, 128).
    """
    L, D, _ = wt.shape
    d_pad = _round_up(D, 128)
    w = jnp.zeros((L, d_pad, 2 * d_pad), jnp.float32)
    w = w.at[:, :D, :D].set(wt).at[:, :D, d_pad:d_pad + D].set(wh)
    b = jnp.zeros((L, 1, 2 * d_pad), jnp.float32)
    b = b.at[:, 0, :D].set(bt).at[:, 0, d_pad:d_pad + D].set(bh)
    # TODO(synk): for D <= 64 a packed round_up(2D,128)-column layout (gate/relu
    # split via lane mask + roll) would halve the padded MXU work; skipped since
    # the production ELMo case is D=512.
    return w.astype(jnp.bfloat16), b


# --------------------------------------------------------------------------- #
# Forward
# --------------------------------------------------------------------------- #
def highway_apply(x, w_fused, b_fused, *, tm=None):
    """Apply the highway stack to x[..., D] using the prepared fused params."""
    orig_shape = x.shape
    D = orig_shape[-1]
    L, d_pad, two_dp = w_fused.shape
    assert two_dp == 2 * d_pad and d_pad == _round_up(D, 128)

    x2d = x.reshape(-1, D)                     # keep native dtype (f32 or bf16)
    M = x2d.shape[0]

    if D == d_pad:
        # Fast path (D % 128 == 0): no HBM pad-in copy, no slice-out copy.
        # Rows are never padded: the last ragged row block reads an undefined
        # overhang, but rows are independent and OOB stores are masked.
        xk = x2d
    else:
        # Pad the feature dim with explicit zeros; zero lanes stay exactly
        # zero through every layer (zero weight rows/cols + zero bias).
        xk = jnp.zeros((M, d_pad), x2d.dtype).at[:, :D].set(x2d)

    io_itemsize = xk.dtype.itemsize
    vmem_budget = _vmem_capacity_bytes() * 3 // 4   # ~48 MiB v7x, ~96 MiB v5e/v6e
    if tm is None:
        tm = _choose_tm(M, d_pad, L, io_itemsize, vmem_budget)
    assert tm % 128 == 0 and tm >= 128

    grid = (pl.cdiv(M, tm),)

    footprint = _footprint_bytes(tm, d_pad, L, io_itemsize)
    vmem_limit = int(min(max(2 * footprint, 32 * 2**20), vmem_budget))

    cost = pl.CostEstimate(
        flops=2 * M * d_pad * (2 * d_pad) * L + 6 * M * d_pad * L,
        transcendentals=M * d_pad * L,              # sigmoid
        bytes_accessed=(2 * M * d_pad * io_itemsize
                        + w_fused.size * 2 + b_fused.size * 4),
    )

    kernel = functools.partial(highway_kernel, n_layers=L, d_pad=d_pad)

    out = pl.pallas_call(
        kernel,
        out_shape=jax.ShapeDtypeStruct((M, d_pad), xk.dtype),
        grid_spec=pltpu.PrefetchScalarGridSpec(
            num_scalar_prefetch=0,
            grid=grid,
            in_specs=[
                pl.BlockSpec((tm, d_pad), lambda i: (i, 0)),               # x rows
                # Constant index_map: DMA'd once, VMEM-resident for the whole
                # grid (no re-fetch when the block index repeats).  Footprint
                # is small (bf16), so default double-buffering is fine here.
                pl.BlockSpec((L, d_pad, 2 * d_pad), lambda i: (0, 0, 0)),  # fused W
                pl.BlockSpec((L, 1, 2 * d_pad), lambda i: (0, 0, 0)),      # fused bias
            ],
            out_specs=pl.BlockSpec((tm, d_pad), lambda i: (i, 0)),
        ),
        compiler_params=pltpu.CompilerParams(
            dimension_semantics=("parallel",),
            vmem_limit_bytes=vmem_limit,
        ),
        cost_estimate=cost,
    )(xk, w_fused, b_fused)

    if D != d_pad:
        out = out[:, :D]
    return out.reshape(orig_shape)


# --------------------------------------------------------------------------- #
# Init matching the PyTorch module + pure-JAX reference
# --------------------------------------------------------------------------- #
def init_highway_params(key, input_size, n_layers):
    """Matches the PyTorch __init__:
       T.weight, H.weight ~ N(0, sqrt(1/input_size)); T.bias = -2; H.bias = 0.
    nn.Linear computes x @ W.T, so weights are stored pre-transposed [L, in, out]."""
    kt, kh = jax.random.split(key)
    std = jnp.sqrt(1.0 / input_size)
    wt = (jax.random.normal(kt, (n_layers, input_size, input_size), jnp.float32)
          * std).transpose(0, 2, 1)
    wh = (jax.random.normal(kh, (n_layers, input_size, input_size), jnp.float32)
          * std).transpose(0, 2, 1)
    bt = jnp.full((n_layers, input_size), -2.0, jnp.float32)
    bh = jnp.zeros((n_layers, input_size), jnp.float32)
    return wt, bt, wh, bh


def highway_reference(x, wt, bt, wh, bh):
    """Pure-JAX f32 reference with PyTorch-identical semantics."""
    for l in range(wt.shape[0]):
        g = jax.nn.sigmoid(x @ wt[l] + bt[l])
        y = jax.nn.relu(x @ wh[l] + bh[l])
        x = g * y + (1.0 - g) * x
    return x


if __name__ == "__main__":
    def run_case(key, input_size, n_layers, batch, seq):
        kx, kp = jax.random.split(key)
        x = jax.random.normal(kx, (batch, seq, input_size), dtype=jnp.float32)
        wt, bt, wh, bh = init_highway_params(kp, input_size, n_layers)
        w_fused, b_fused = prepare_highway_params(wt, bt, wh, bh)   # one-time prep
        out = jax.block_until_ready(highway_apply(x, w_fused, b_fused))
        ref = highway_reference(x.reshape(-1, input_size), wt, bt, wh, bh)
        ref = ref.reshape(x.shape)
        assert out.shape == x.shape and out.dtype == x.dtype
        max_err = float(jnp.max(jnp.abs(out - ref)))
        # bf16 matmul operands (f32 accumulation + f32 residual) => loosened tol.
        assert jnp.allclose(out, ref, atol=5e-2, rtol=5e-2), (
            f"D={input_size}: mismatch vs reference, max abs err = {max_err}")

    key = jax.random.PRNGKey(0)
    k1, k2 = jax.random.split(key)
    run_case(k1, 32, 2, 2, 8)    # padded-feature path (D % 128 != 0), ragged row block
    run_case(k2, 128, 2, 2, 8)   # lane-aligned fast path (no pad/slice HBM copies)
    print("KERNEL_OK")
</pallas_src>

<mosaic_0001>
module attributes {stable_mosaic.version = 11 : i64} {
  func.func @highway_kernel(%arg0: i32, %arg1: memref<128x128xf32, #tpu.memory_space<vmem>>, %arg2: memref<2x128x256xbf16, #tpu.memory_space<vmem>>, %arg3: memref<2x1x256xf32, #tpu.memory_space<vmem>>, %arg4: memref<128x128xf32, #tpu.memory_space<vmem>>) attributes {dimension_semantics = [#tpu.dimension_semantics<parallel>], iteration_bounds = array<i64: 1>, scalar_prefetch = 0 : i64, scratch_operands = 0 : i64, tpu.core_type = #tpu.core_type<tc>, window_params = [{transform_indices = @transform_0, window_bounds = array<i64: 128, 128>}, {pipeline_mode = #tpu.pipeline_mode<synchronous>, transform_indices = @transform_1, window_bounds = array<i64: 2, 128, 256>}, {pipeline_mode = #tpu.pipeline_mode<synchronous>, transform_indices = @transform_2, window_bounds = array<i64: 2, 1, 256>}, {transform_indices = @transform_3, window_bounds = array<i64: 128, 128>}]} {
    %c0 = arith.constant 0 : index
    %c0_0 = arith.constant 0 : index
    %0 = vector.load %arg1[%c0, %c0_0] : memref<128x128xf32, #tpu.memory_space<vmem>>, vector<128x128xf32>
    %1 = arith.truncf %0 : vector<128x128xf32> to vector<128x128xbf16>
    %c0_1 = arith.constant 0 : index
    %c0_2 = arith.constant 0 : index
    %c0_3 = arith.constant 0 : index
    %2 = vector.load %arg2[%c0_1, %c0_2, %c0_3] : memref<2x128x256xbf16, #tpu.memory_space<vmem>>, vector<1x128x256xbf16>
    %3 = vector.shape_cast %2 : vector<1x128x256xbf16> to vector<128x256xbf16>
    %cst = arith.constant dense<0.000000e+00> : vector<128x256xf32>
    %4 = tpu.matmul %1, %3, %cst {dimension_numbers = #tpu.dot_dimension_numbers<[1], [0], [0], [1], [0, 0, 1, 1], [], []>} : vector<128x128xbf16>, vector<128x256xbf16>, vector<128x256xf32> -> vector<128x256xf32>
    %c0_4 = arith.constant 0 : index
    %c0_5 = arith.constant 0 : index
    %c0_6 = arith.constant 0 : index
    %5 = vector.load %arg3[%c0_4, %c0_5, %c0_6] : memref<2x1x256xf32, #tpu.memory_space<vmem>>, vector<1x1x256xf32>
    %6 = vector.shape_cast %5 : vector<1x1x256xf32> to vector<1x256xf32>
    %7 = vector.broadcast %6 : vector<1x256xf32> to vector<128x256xf32>
    %8 = arith.addf %4, %7 : vector<128x256xf32>
    %9 = vector.extract_strided_slice %8 {offsets = [0, 0], sizes = [128, 128], strides = [1, 1]} : vector<128x256xf32> to vector<128x128xf32>
    %10 = arith.negf %9 : vector<128x128xf32>
    %11 = math.exp %10 : vector<128x128xf32>
    %cst_7 = arith.constant 1.000000e+00 : f32
    %12 = vector.broadcast %cst_7 : f32 to vector<128x128xf32>
    %13 = arith.addf %12, %11 : vector<128x128xf32>
    %14 = arith.divf %12, %13 : vector<128x128xf32>
    %15 = vector.extract_strided_slice %8 {offsets = [0, 128], sizes = [128, 128], strides = [1, 1]} : vector<128x256xf32> to vector<128x128xf32>
    %cst_8 = arith.constant 0.000000e+00 : f32
    %16 = vector.broadcast %cst_8 : f32 to vector<128x128xf32>
    %17 = arith.maximumf %15, %16 : vector<128x128xf32>
    %18 = arith.subf %17, %0 : vector<128x128xf32>
    %19 = arith.mulf %14, %18 : vector<128x128xf32>
    %20 = arith.addf %0, %19 : vector<128x128xf32>
    %21 = arith.truncf %20 : vector<128x128xf32> to vector<128x128xbf16>
    %c1 = arith.constant 1 : index
    %c0_9 = arith.constant 0 : index
    %c0_10 = arith.constant 0 : index
    %22 = vector.load %arg2[%c1, %c0_9, %c0_10] : memref<2x128x256xbf16, #tpu.memory_space<vmem>>, vector<1x128x256xbf16>
    %23 = vector.shape_cast %22 : vector<1x128x256xbf16> to vector<128x256xbf16>
    %cst_11 = arith.constant dense<0.000000e+00> : vector<128x256xf32>
    %24 = tpu.matmul %21, %23, %cst_11 {dimension_numbers = #tpu.dot_dimension_numbers<[1], [0], [0], [1], [0, 0, 1, 1], [], []>} : vector<128x128xbf16>, vector<128x256xbf16>, vector<128x256xf32> -> vector<128x256xf32>
    %c1_12 = arith.constant 1 : index
    %c0_13 = arith.constant 0 : index
    %c0_14 = arith.constant 0 : index
    %25 = vector.load %arg3[%c1_12, %c0_13, %c0_14] : memref<2x1x256xf32, #tpu.memory_space<vmem>>, vector<1x1x256xf32>
    %26 = vector.shape_cast %25 : vector<1x1x256xf32> to vector<1x256xf32>
    %27 = vector.broadcast %26 : vector<1x256xf32> to vector<128x256xf32>
    %28 = arith.addf %24, %27 : vector<128x256xf32>
    %29 = vector.extract_strided_slice %28 {offsets = [0, 0], sizes = [128, 128], strides = [1, 1]} : vector<128x256xf32> to vector<128x128xf32>
    %30 = arith.negf %29 : vector<128x128xf32>
    %31 = math.exp %30 : vector<128x128xf32>
    %cst_15 = arith.constant 1.000000e+00 : f32
    %32 = vector.broadcast %cst_15 : f32 to vector<128x128xf32>
    %33 = arith.addf %32, %31 : vector<128x128xf32>
    %34 = arith.divf %32, %33 : vector<128x128xf32>
    %35 = vector.extract_strided_slice %28 {offsets = [0, 128], sizes = [128, 128], strides = [1, 1]} : vector<128x256xf32> to vector<128x128xf32>
    %cst_16 = arith.constant 0.000000e+00 : f32
    %36 = vector.broadcast %cst_16 : f32 to vector<128x128xf32>
    %37 = arith.maximumf %35, %36 : vector<128x128xf32>
    %38 = arith.subf %37, %20 : vector<128x128xf32>
    %39 = arith.mulf %34, %38 : vector<128x128xf32>
    %40 = arith.addf %20, %39 : vector<128x128xf32>
    %c0_17 = arith.constant 0 : index
    %c0_18 = arith.constant 0 : index
    %41 = vector.load %arg4[%c0_17, %c0_18] : memref<128x128xf32, #tpu.memory_space<vmem>>, vector<128x128xf32>
    tpu.vector_store %arg4[%c0_17, %c0_18], %40 {strides = array<i32>} : memref<128x128xf32, #tpu.memory_space<vmem>>, vector<128x128xf32>,
    return
  }
  func.func @transform_0(%arg0: i32) -> (i32, i32) {
    %c0_i32 = arith.constant 0 : i32
    %c0_i32_0 = arith.constant 0 : i32
    return %arg0, %c0_i32 : i32, i32
  }
  func.func @transform_1(%arg0: i32) -> (i32, i32, i32) {
    %c0_i32 = arith.constant 0 : i32
    %c0_i32_0 = arith.constant 0 : i32
    %c0_i32_1 = arith.constant 0 : i32
    %c0_i32_2 = arith.constant 0 : i32
    return %c0_i32, %c0_i32_0, %c0_i32_1 : i32, i32, i32
  }
  func.func @transform_2(%arg0: i32) -> (i32, i32, i32) {
    %c0_i32 = arith.constant 0 : i32
    %c0_i32_0 = arith.constant 0 : i32
    %c0_i32_1 = arith.constant 0 : i32
    %c0_i32_2 = arith.constant 0 : i32
    return %c0_i32, %c0_i32_0, %c0_i32_1 : i32, i32, i32
  }
  func.func @transform_3(%arg0: i32) -> (i32, i32) {
    %c0_i32 = arith.constant 0 : i32
    %c0_i32_0 = arith.constant 0 : i32
    return %arg0, %c0_i32 : i32, i32
  }
}

</mosaic_0001>

<llo_original>
// kernel: tpu_custom_call.1
$region0: #{tpu_custom_call.1}
  #allocation0 [shape = 'u32[]', space=smem, size = 0x4, offset = 0x4, fixed_abs, tag = 'smem constant byte address 0x4 - core index']
  #allocation1 [shape = 'u32[144,128]{1,0:T(1,128)}', space=vmem, size = 0x12000, scoped, tag = 'internal scratch']
  %s0 = inlined_call_operand.hbm [shape: f32[16,128], index: 0, kind: input, shape index: {}]
  %s1 = inlined_call_operand.hbm [shape: bf16[2,128,256], index: 1, kind: input, shape index: {}]
  %s2 = inlined_call_operand.vmem [shape: f32[2,1,256], index: 2, kind: input, shape index: {}]
  %s3 = inlined_call_operand.hbm [shape: f32[16,128], index: 3, kind: output, shape index: {}]
  %s4 = sld [smem:[#allocation0]]
  $region30: #{tpu_custom_call.1} parent=0
    _
  %s6 = ssub.s32 1, %s4
  %s7 = scalar_select 0, %s6, %s4
  $region1: #{tpu_custom_call.1} parent=0
    #allocation2 [shape = 'u8[65536]{0}', space=vmem, size = 0x10000, scoped, tag = 'input window, operand 0, single buffered']
    #allocation3 [shape = 's32[1]{0}', space=sflag, size = 0x4, scoped, tag = 'scoped memory for tpu_custom_call.1']
    #allocation4 [shape = 's32[1]{0}', space=sflag, size = 0x4, scoped, tag = 'scoped memory for tpu_custom_call.1']
    #allocation5 [shape = 'u8[131072]{0}', space=vmem, size = 0x20000, scoped, tag = 'input window, operand 1, single buffered']
    #allocation6 [shape = 's32[1]{0}', space=sflag, size = 0x4, scoped, tag = 'scoped memory for tpu_custom_call.1']
    #allocation7 [shape = 'u8[65536]{0}', space=vmem, size = 0x10000, scoped, tag = 'output window, operand 0, single buffered']
    %8 = vsyncpa [#allocation3], 0
    %9 = vsyncpa [#allocation6], 0
    %10 = vsyncpa [#allocation4], 0
    // Predicated region
    $region2: #{tpu_custom_call.1} parent=1 // pred_check
      _
    $region3: #{tpu_custom_call.1} parent=1 // pred_check_branch
      %12 = sbr.rel (0) target = $region5
    $region4: #{tpu_custom_call.1} parent=1 // pred_region
      %s14 = ssub.s32 2048, 256
      %15 = vsyncadd [#allocation3], %s14
      %s16 = sshll.u32 [#allocation2], 4
      %s17 = int_to_ptr.vmem [resolvable:$true] %s16
      %22 = dma.hbm_to_vmem [thread:$0]  %s0, 256, %s17, [#allocation3], 128, 128, 8
    $region5: #{tpu_custom_call.1} parent=1 // pred_fallthru
      _
    // Predicated region
    $region6: #{tpu_custom_call.1} parent=1 // pred_check
      _
    $region7: #{tpu_custom_call.1} parent=1 // pred_check_branch
      %24 = sbr.rel (0) target = $region9
    $region8: #{tpu_custom_call.1} parent=1 // pred_region
      %s26 = ssub.s32 4096, 4096
      %27 = vsyncadd [#allocation6], %s26
      %s28 = sshll.u32 [#allocation5], 4
      %s29 = int_to_ptr.vmem [resolvable:$true] %s28
      %34 = dma.hbm_to_vmem [thread:$0]  %s1, 4096, %s29, [#allocation6], 128, 128, 8
    $region9: #{tpu_custom_call.1} parent=1 // pred_fallthru
      _
    // Predicated region
    $region10: #{tpu_custom_call.1} parent=1 // pred_check
      _
    $region11: #{tpu_custom_call.1} parent=1 // pred_check_branch
      %36 = sbr.rel (0) target = $region13
    $region12: #{tpu_custom_call.1} parent=1 // pred_region
      _
    $region13: #{tpu_custom_call.1} parent=1 // pred_fallthru
      _
    // Predicated region
    $region14: #{tpu_custom_call.1} parent=1 // pred_check
      _
    $region15: #{tpu_custom_call.1} parent=1 // pred_check_branch
      %38 = sbr.rel (0) target = $region17
    $region16: #{tpu_custom_call.1} parent=1 // pred_region
      %39 = dma.done [#allocation3], 2048
    $region17: #{tpu_custom_call.1} parent=1 // pred_fallthru
      _
    // Predicated region
    $region18: #{tpu_custom_call.1} parent=1 // pred_check
      _
    $region19: #{tpu_custom_call.1} parent=1 // pred_check_branch
      %41 = sbr.rel (0) target = $region21
    $region20: #{tpu_custom_call.1} parent=1 // pred_region
      %42 = dma.done [#allocation6], 4096
    $region21: #{tpu_custom_call.1} parent=1 // pred_fallthru
      _
    %v44 = vld [vmem:[#allocation2] sm:$0xff]
    %v45 = vld [vmem:[#allocation2 + $0x8] sm:$0xff]
    %v46 = vld [vmem:[#allocation2 + $0x10] sm:$0xff]
    %v47 = vld [vmem:[#allocation2 + $0x18] sm:$0xff]
    %v48 = vld [vmem:[#allocation2 + $0x20] sm:$0xff]
    %v49 = vld [vmem:[#allocation2 + $0x28] sm:$0xff]
    %v50 = vld [vmem:[#allocation2 + $0x30] sm:$0xff]
    %v51 = vld [vmem:[#allocation2 + $0x38] sm:$0xff]
    %v52 = vld [vmem:[#allocation2 + $0x40] sm:$0xff]
    %v53 = vld [vmem:[#allocation2 + $0x48] sm:$0xff]
    %v54 = vld [vmem:[#allocation2 + $0x50] sm:$0xff]
    %v55 = vld [vmem:[#allocation2 + $0x58] sm:$0xff]
    %v56 = vld [vmem:[#allocation2 + $0x60] sm:$0xff]
    %v57 = vld [vmem:[#allocation2 + $0x68] sm:$0xff]
    %v58 = vld [vmem:[#allocation2 + $0x70] sm:$0xff]
    %v59 = vld [vmem:[#allocation2 + $0x78] sm:$0xff]
    %v60 = vpack.c.bf16 %v45, %v44
    %v61 = vpack.c.bf16 %v47, %v46
    %v62 = vpack.c.bf16 %v49, %v48
    %v63 = vpack.c.bf16 %v51, %v50
    %v64 = vpack.c.bf16 %v53, %v52
    %v65 = vpack.c.bf16 %v55, %v54
    %v66 = vpack.c.bf16 %v57, %v56
    %v67 = vpack.c.bf16 %v59, %v58
    %v68 = vld [vmem:[#allocation5] sm:$0xff]
    %v69 = vld [vmem:[#allocation5 + $0x8] sm:$0xff]
    %v70 = vld [vmem:[#allocation5 + $0x10] sm:$0xff]
    %v71 = vld [vmem:[#allocation5 + $0x18] sm:$0xff]
    %v72 = vld [vmem:[#allocation5 + $0x20] sm:$0xff]
    %v73 = vld [vmem:[#allocation5 + $0x28] sm:$0xff]
    %v74 = vld [vmem:[#allocation5 + $0x30] sm:$0xff]
    %v75 = vld [vmem:[#allocation5 + $0x38] sm:$0xff]
    %v76 = vld [vmem:[#allocation5 + $0x40] sm:$0xff]
    %v77 = vld [vmem:[#allocation5 + $0x48] sm:$0xff]
    %v78 = vld [vmem:[#allocation5 + $0x50] sm:$0xff]
    %v79 = vld [vmem:[#allocation5 + $0x58] sm:$0xff]
    %v80 = vld [vmem:[#allocation5 + $0x60] sm:$0xff]
    %v81 = vld [vmem:[#allocation5 + $0x68] sm:$0xff]
    %v82 = vld [vmem:[#allocation5 + $0x70] sm:$0xff]
    %v83 = vld [vmem:[#allocation5 + $0x78] sm:$0xff]
    %v84 = vld [vmem:[%s2] sm:$0x3]
    %v86 = vlaneseq
    %v87 = vshrl.u32 %v86, 7
    %v88 = vsub.s32 0, %v87
    %v89 = vrot.slane %v84, %v88
    %v90 = vlaneseq
    %v91 = vshrl.u32 %v90, 7
    %v92 = vsub.s32 1, %v91
    %v93 = vrot.slane %v84, %v92
    %v112 = vunpack.c.l.b16 %v68
    %v113 = vunpack.c.h.b16 %v68
    %v114 = vunpack.c.l.b16 %v69
    %v115 = vunpack.c.h.b16 %v69
    %v116 = vunpack.c.l.b16 %v70
    %v117 = vunpack.c.h.b16 %v70
    %v118 = vunpack.c.l.b16 %v71
    %v119 = vunpack.c.h.b16 %v71
    %v120 = vunpack.c.l.b16 %v72
    %v121 = vunpack.c.h.b16 %v72
    %v122 = vunpack.c.l.b16 %v73
    %v123 = vunpack.c.h.b16 %v73
    %v124 = vunpack.c.l.b16 %v74
    %v125 = vunpack.c.h.b16 %v74
    %v126 = vunpack.c.l.b16 %v75
    %v127 = vunpack.c.h.b16 %v75
    %v128 = vunpack.c.l.b16 %v76
    %v129 = vunpack.c.h.b16 %v76
    %v130 = vunpack.c.l.b16 %v77
    %v131 = vunpack.c.h.b16 %v77
    %v132 = vunpack.c.l.b16 %v78
    %v133 = vunpack.c.h.b16 %v78
    %v134 = vunpack.c.l.b16 %v79
    %v135 = vunpack.c.h.b16 %v79
    %v136 = vunpack.c.l.b16 %v80
    %v137 = vunpack.c.h.b16 %v80
    %v138 = vunpack.c.l.b16 %v81
    %v139 = vunpack.c.h.b16 %v81
    %v140 = vunpack.c.l.b16 %v82
    %v141 = vunpack.c.h.b16 %v82
    %v142 = vunpack.c.l.b16 %v83
    %v143 = vunpack.c.h.b16 %v83
    %v144 = vpack.c.b16 %v114, %v112
    %v145 = vpack.c.b16 %v115, %v113
    %v146 = vpack.c.b16 %v118, %v116
    %v147 = vpack.c.b16 %v119, %v117
    %v148 = vpack.c.b16 %v122, %v120
    %v149 = vpack.c.b16 %v123, %v121
    %v150 = vpack.c.b16 %v126, %v124
    %v151 = vpack.c.b16 %v127, %v125
    %v152 = vpack.c.b16 %v130, %v128
    %v153 = vpack.c.b16 %v131, %v129
    %v154 = vpack.c.b16 %v134, %v132
    %v155 = vpack.c.b16 %v135, %v133
    %v156 = vpack.c.b16 %v138, %v136
    %v157 = vpack.c.b16 %v139, %v137
    %v158 = vpack.c.b16 %v142, %v140
    %v159 = vpack.c.b16 %v143, %v141
    %176 = vmatprep.subr.bf16.mxu0 %v145
    %177 = vmatpush1.bf16.msra.mxu0 %v144
    %178 = vmatprep.subr.bf16.mxu0 %v147
    %179 = vmatpush1.bf16.msra.mxu0 %v146
    %180 = vmatprep.subr.bf16.mxu0 %v149
    %181 = vmatpush1.bf16.msra.mxu0 %v148
    %182 = vmatprep.subr.bf16.mxu0 %v151
    %183 = vmatpush1.bf16.msra.mxu0 %v150
    %184 = vmatprep.subr.bf16.mxu0 %v153
    %185 = vmatpush1.bf16.msra.mxu0 %v152
    %186 = vmatprep.subr.bf16.mxu0 %v155
    %187 = vmatpush1.bf16.msra.mxu0 %v154
    %188 = vmatprep.subr.bf16.mxu0 %v157
    %189 = vmatpush1.bf16.msra.mxu0 %v156
    %190 = vmatprep.subr.bf16.mxu0 %v159
    %191 = vmatpush1.bf16.msra.mxu0 %v158
    %192 = vmatprep.subr.bf16.mxu0 0
    %193 = vmatpush1.bf16.msra.mxu0 0
    %194 = vmatprep.subr.bf16.mxu0 0
    %195 = vmatpush1.bf16.msra.mxu0 0
    %196 = vmatprep.subr.bf16.mxu0 0
    %197 = vmatpush1.bf16.msra.mxu0 0
    %198 = vmatprep.subr.bf16.mxu0 0
    %199 = vmatpush1.bf16.msra.mxu0 0
    %200 = vmatprep.subr.bf16.mxu0 0
    %201 = vmatpush1.bf16.msra.mxu0 0
    %202 = vmatprep.subr.bf16.mxu0 0
    %203 = vmatpush1.bf16.msra.mxu0 0
    %204 = vmatprep.subr.bf16.mxu0 0
    %205 = vmatpush1.bf16.msra.mxu0 0
    %206 = vmatprep.subr.bf16.mxu0 0
    %207 = vmatpush1.bf16.msra.mxu0 0
    %208 = vmatprep.mubr.bf16.mxu0 0
    %209 = vmatmul.mubr.bf16.gmra.mrb[0].mxu0 %v60
    %v210 = vpop.f32.mrb[0].mxu0
    %v211 = vadd.f32 %v89, %v210
    %v212 = vpop.f32.mrb[0].mxu0
    %v213 = vadd.f32 %v93, %v212
    %v214 = vpop.f32.mrb[0].mxu0
    %v215 = vadd.f32 %v89, %v214
    %v216 = vpop.f32.mrb[0].mxu0
    %v217 = vadd.f32 %v93, %v216
    %218 = vmatprep.mubr.bf16.mxu0 0
    %219 = vmatmul.mubr.bf16.gmra.mrb[0].mxu0 %v61
    %v220 = vpop.f32.mrb[0].mxu0
    %v221 = vadd.f32 %v89, %v220
    %v222 = vpop.f32.mrb[0].mxu0
    %v223 = vadd.f32 %v93, %v222
    %v224 = vpop.f32.mrb[0].mxu0
    %v225 = vadd.f32 %v89, %v224
    %v226 = vpop.f32.mrb[0].mxu0
    %v227 = vadd.f32 %v93, %v226
    %228 = vmatprep.mubr.bf16.mxu0 0
    %229 = vmatmul.mubr.bf16.gmra.mrb[0].mxu0 %v62
    %v230 = vpop.f32.mrb[0].mxu0
    %v231 = vadd.f32 %v89, %v230
    %v232 = vpop.f32.mrb[0].mxu0
    %v233 = vadd.f32 %v93, %v232
    %v234 = vpop.f32.mrb[0].mxu0
    %v235 = vadd.f32 %v89, %v234
    %v236 = vpop.f32.mrb[0].mxu0
    %v237 = vadd.f32 %v93, %v236
    %238 = vmatprep.mubr.bf16.mxu0 0
    %239 = vmatmul.mubr.bf16.gmra.mrb[0].mxu0 %v63
    %v240 = vpop.f32.mrb[0].mxu0
    %v241 = vadd.f32 %v89, %v240
    %v242 = vpop.f32.mrb[0].mxu0
    %v243 = vadd.f32 %v93, %v242
    %v244 = vpop.f32.mrb[0].mxu0
    %v245 = vadd.f32 %v89, %v244
    %v246 = vpop.f32.mrb[0].mxu0
    %v247 = vadd.f32 %v93, %v246
    %248 = vmatprep.mubr.bf16.mxu0 0
    %249 = vmatmul.mubr.bf16.gmra.mrb[0].mxu0 %v64
    %v250 = vpop.f32.mrb[0].mxu0
    %v251 = vadd.f32 %v89, %v250
    %v252 = vpop.f32.mrb[0].mxu0
    %v253 = vadd.f32 %v93, %v252
    %v254 = vpop.f32.mrb[0].mxu0
    %v255 = vadd.f32 %v89, %v254
    %v256 = vpop.f32.mrb[0].mxu0
    %v257 = vadd.f32 %v93, %v256
    %258 = vmatprep.mubr.bf16.mxu0 0
    %259 = vmatmul.mubr.bf16.gmra.mrb[0].mxu0 %v65
    %v260 = vpop.f32.mrb[0].mxu0
    %v261 = vadd.f32 %v89, %v260
    %v262 = vpop.f32.mrb[0].mxu0
    %v263 = vadd.f32 %v93, %v262
    %v264 = vpop.f32.mrb[0].mxu0
    %v265 = vadd.f32 %v89, %v264
    %v266 = vpop.f32.mrb[0].mxu0
    %v267 = vadd.f32 %v93, %v266
    %268 = vmatprep.mubr.bf16.mxu0 0
    %269 = vmatmul.mubr.bf16.gmra.mrb[0].mxu0 %v66
    %v270 = vpop.f32.mrb[0].mxu0
    %v271 = vadd.f32 %v89, %v270
    %v272 = vpop.f32.mrb[0].mxu0
    %v273 = vadd.f32 %v93, %v272
    %v274 = vpop.f32.mrb[0].mxu0
    %v275 = vadd.f32 %v89, %v274
    %v276 = vpop.f32.mrb[0].mxu0
    %v277 = vadd.f32 %v93, %v276
    %278 = vmatprep.mubr.bf16.mxu0 0
    %279 = vmatmul.mubr.bf16.gmra.mrb[0].mxu0 %v67
    %v280 = vpop.f32.mrb[0].mxu0
    %v281 = vadd.f32 %v89, %v280
    %v282 = vpop.f32.mrb[0].mxu0
    %v283 = vadd.f32 %v93, %v282
    %v284 = vpop.f32.mrb[0].mxu0
    %v285 = vadd.f32 %v89, %v284
    %v286 = vpop.f32.mrb[0].mxu0
    %v287 = vadd.f32 %v93, %v286
    %288 = vdwg.mxu0
    %v289 = vxor.u32 %v211, 2147483648
    %v290 = vxor.u32 %v215, 2147483648
    %v291 = vxor.u32 %v221, 2147483648
    %v292 = vxor.u32 %v225, 2147483648
    %v293 = vxor.u32 %v231, 2147483648
    %v294 = vxor.u32 %v235, 2147483648
    %v295 = vxor.u32 %v241, 2147483648
    %v296 = vxor.u32 %v245, 2147483648
    %v297 = vxor.u32 %v251, 2147483648
    %v298 = vxor.u32 %v255, 2147483648
    %v299 = vxor.u32 %v261, 2147483648
    %v300 = vxor.u32 %v265, 2147483648
    %v301 = vxor.u32 %v271, 2147483648
    %v302 = vxor.u32 %v275, 2147483648
    %v303 = vxor.u32 %v281, 2147483648
    %v304 = vxor.u32 %v285, 2147483648
    %v305 = vmul.f32 %v289, 1.442695
    %v306 = vpow.pop %v305
    %v307 = vmul.f32 %v290, 1.442695
    %v308 = vpow.pop %v307
    %v309 = vmul.f32 %v291, 1.442695
    %v310 = vpow.pop %v309
    %v311 = vmul.f32 %v292, 1.442695
    %v312 = vpow.pop %v311
    %v313 = vmul.f32 %v293, 1.442695
    %v314 = vpow.pop %v313
    %v315 = vmul.f32 %v294, 1.442695
    %v316 = vpow.pop %v315
    %v317 = vmul.f32 %v295, 1.442695
    %v318 = vpow.pop %v317
    %v319 = vmul.f32 %v296, 1.442695
    %v320 = vpow.pop %v319
    %v321 = vmul.f32 %v297, 1.442695
    %v322 = vpow.pop %v321
    %v323 = vmul.f32 %v298, 1.442695
    %v324 = vpow.pop %v323
    %v325 = vmul.f32 %v299, 1.442695
    %v326 = vpow.pop %v325
    %v327 = vmul.f32 %v300, 1.442695
    %v328 = vpow.pop %v327
    %v329 = vmul.f32 %v301, 1.442695
    %v330 = vpow.pop %v329
    %v331 = vmul.f32 %v302, 1.442695
    %v332 = vpow.pop %v331
    %v333 = vmul.f32 %v303, 1.442695
    %v334 = vpow.pop %v333
    %v335 = vmul.f32 %v304, 1.442695
    %v336 = vpow.pop %v335
    %v337 = vadd.f32 %v306, 1.0
    %v338 = vadd.f32 %v308, 1.0
    %v339 = vadd.f32 %v310, 1.0
    %v340 = vadd.f32 %v312, 1.0
    %v341 = vadd.f32 %v314, 1.0
    %v342 = vadd.f32 %v316, 1.0
    %v343 = vadd.f32 %v318, 1.0
    %v344 = vadd.f32 %v320, 1.0
    %v345 = vadd.f32 %v322, 1.0
    %v346 = vadd.f32 %v324, 1.0
    %v347 = vadd.f32 %v326, 1.0
    %v348 = vadd.f32 %v328, 1.0
    %v349 = vadd.f32 %v330, 1.0
    %v350 = vadd.f32 %v332, 1.0
    %v351 = vadd.f32 %v334, 1.0
    %v352 = vadd.f32 %v336, 1.0
    %v353 = vrcp.pop %v337
    %v354 = vmul.f32 1.0, %v353
    %v355 = vrcp.pop %v338
    %v356 = vmul.f32 1.0, %v355
    %v357 = vrcp.pop %v339
    %v358 = vmul.f32 1.0, %v357
    %v359 = vrcp.pop %v340
    %v360 = vmul.f32 1.0, %v359
    %v361 = vrcp.pop %v341
    %v362 = vmul.f32 1.0, %v361
    %v363 = vrcp.pop %v342
    %v364 = vmul.f32 1.0, %v363
    %v365 = vrcp.pop %v343
    %v366 = vmul.f32 1.0, %v365
    %v367 = vrcp.pop %v344
    %v368 = vmul.f32 1.0, %v367
    %v369 = vrcp.pop %v345
    %v370 = vmul.f32 1.0, %v369
    %v371 = vrcp.pop %v346
    %v372 = vmul.f32 1.0, %v371
    %v373 = vrcp.pop %v347
    %v374 = vmul.f32 1.0, %v373
    %v375 = vrcp.pop %v348
    %v376 = vmul.f32 1.0, %v375
    %v377 = vrcp.pop %v349
    %v378 = vmul.f32 1.0, %v377
    %v379 = vrcp.pop %v350
    %v380 = vmul.f32 1.0, %v379
    %v381 = vrcp.pop %v351
    %v382 = vmul.f32 1.0, %v381
    %v383 = vrcp.pop %v352
    %v384 = vmul.f32 1.0, %v383
    %v385 = vmax.f32 %v213, 0.0
    %v386 = vmax.f32 %v217, 0.0
    %v387 = vmax.f32 %v223, 0.0
    %v388 = vmax.f32 %v227, 0.0
    %v389 = vmax.f32 %v233, 0.0
    %v390 = vmax.f32 %v237, 0.0
    %v391 = vmax.f32 %v243, 0.0
    %v392 = vmax.f32 %v247, 0.0
    %v393 = vmax.f32 %v253, 0.0
    %v394 = vmax.f32 %v257, 0.0
    %v395 = vmax.f32 %v263, 0.0
    %v396 = vmax.f32 %v267, 0.0
    %v397 = vmax.f32 %v273, 0.0
    %v398 = vmax.f32 %v277, 0.0
    %v399 = vmax.f32 %v283, 0.0
    %v400 = vmax.f32 %v287, 0.0
    %v401 = vsub.f32 %v385, %v44
    %v402 = vsub.f32 %v386, %v45
    %v403 = vsub.f32 %v387, %v46
    %v404 = vsub.f32 %v388, %v47
    %v405 = vsub.f32 %v389, %v48
    %v406 = vsub.f32 %v390, %v49
    %v407 = vsub.f32 %v391, %v50
    %v408 = vsub.f32 %v392, %v51
    %v409 = vsub.f32 %v393, %v52
    %v410 = vsub.f32 %v394, %v53
    %v411 = vsub.f32 %v395, %v54
    %v412 = vsub.f32 %v396, %v55
    %v413 = vsub.f32 %v397, %v56
    %v414 = vsub.f32 %v398, %v57
    %v415 = vsub.f32 %v399, %v58
    %v416 = vsub.f32 %v400, %v59
    %v417 = vmul.f32 %v354, %v401
    %v418 = vmul.f32 %v356, %v402
    %v419 = vmul.f32 %v358, %v403
    %v420 = vmul.f32 %v360, %v404
    %v421 = vmul.f32 %v362, %v405
    %v422 = vmul.f32 %v364, %v406
    %v423 = vmul.f32 %v366, %v407
    %v424 = vmul.f32 %v368, %v408
    %v425 = vmul.f32 %v370, %v409
    %v426 = vmul.f32 %v372, %v410
    %v427 = vmul.f32 %v374, %v411
    %v428 = vmul.f32 %v376, %v412
    %v429 = vmul.f32 %v378, %v413
    %v430 = vmul.f32 %v380, %v414
    %v431 = vmul.f32 %v382, %v415
    %v432 = vmul.f32 %v384, %v416
    %v433 = vadd.f32 %v44, %v417
    %v434 = vadd.f32 %v45, %v418
    %v435 = vadd.f32 %v46, %v419
    %v436 = vadd.f32 %v47, %v420
    %v437 = vadd.f32 %v48, %v421
    %v438 = vadd.f32 %v49, %v422
    %v439 = vadd.f32 %v50, %v423
    %v440 = vadd.f32 %v51, %v424
    %v441 = vadd.f32 %v52, %v425
    %v442 = vadd.f32 %v53, %v426
    %v443 = vadd.f32 %v54, %v427
    %v444 = vadd.f32 %v55, %v428
    %v445 = vadd.f32 %v56, %v429
    %v446 = vadd.f32 %v57, %v430
    %v447 = vadd.f32 %v58, %v431
    %v448 = vadd.f32 %v59, %v432
    %v449 = vpack.c.bf16 %v434, %v433
    %v450 = vpack.c.bf16 %v436, %v435
    %v451 = vpack.c.bf16 %v438, %v437
    %v452 = vpack.c.bf16 %v440, %v439
    %v453 = vpack.c.bf16 %v442, %v441
    %v454 = vpack.c.bf16 %v444, %v443
    %v455 = vpack.c.bf16 %v446, %v445
    %v456 = vpack.c.bf16 %v448, %v447
    %s457 = scalar_lea.vmem [#allocation5], 128
    %v458 = vld [vmem:[%s457] sm:$0xff]
    %v459 = vld [vmem:[%s457 + $0x8] sm:$0xff]
    %v460 = vld [vmem:[%s457 + $0x10] sm:$0xff]
    %v461 = vld [vmem:[%s457 + $0x18] sm:$0xff]
    %v462 = vld [vmem:[%s457 + $0x20] sm:$0xff]
    %v463 = vld [vmem:[%s457 + $0x28] sm:$0xff]
    %v464 = vld [vmem:[%s457 + $0x30] sm:$0xff]
    %v465 = vld [vmem:[%s457 + $0x38] sm:$0xff]
    %v466 = vld [vmem:[%s457 + $0x40] sm:$0xff]
    %v467 = vld [vmem:[%s457 + $0x48] sm:$0xff]
    %v468 = vld [vmem:[%s457 + $0x50] sm:$0xff]
    %v469 = vld [vmem:[%s457 + $0x58] sm:$0xff]
    %v470 = vld [vmem:[%s457 + $0x60] sm:$0xff]
    %v471 = vld [vmem:[%s457 + $0x68] sm:$0xff]
    %v472 = vld [vmem:[%s457 + $0x70] sm:$0xff]
    %v473 = vld [vmem:[%s457 + $0x78] sm:$0xff]
    %s474 = scalar_lea.vmem %s2, 2
    %v475 = vld [vmem:[%s474] sm:$0x3]
    %v477 = vlaneseq
    %v478 = vshrl.u32 %v477, 7
    %v479 = vsub.s32 0, %v478
    %v480 = vrot.slane %v475, %v479
    %v481 = vlaneseq
    %v482 = vshrl.u32 %v481, 7
    %v483 = vsub.s32 1, %v482
    %v484 = vrot.slane %v475, %v483
    %v503 = vunpack.c.l.b16 %v458
    %v504 = vunpack.c.h.b16 %v458
    %v505 = vunpack.c.l.b16 %v459
    %v506 = vunpack.c.h.b16 %v459
    %v507 = vunpack.c.l.b16 %v460
    %v508 = vunpack.c.h.b16 %v460
    %v509 = vunpack.c.l.b16 %v461
    %v510 = vunpack.c.h.b16 %v461
    %v511 = vunpack.c.l.b16 %v462
    %v512 = vunpack.c.h.b16 %v462
    %v513 = vunpack.c.l.b16 %v463
    %v514 = vunpack.c.h.b16 %v463
    %v515 = vunpack.c.l.b16 %v464
    %v516 = vunpack.c.h.b16 %v464
    %v517 = vunpack.c.l.b16 %v465
    %v518 = vunpack.c.h.b16 %v465
    %v519 = vunpack.c.l.b16 %v466
    %v520 = vunpack.c.h.b16 %v466
    %v521 = vunpack.c.l.b16 %v467
    %v522 = vunpack.c.h.b16 %v467
    %v523 = vunpack.c.l.b16 %v468
    %v524 = vunpack.c.h.b16 %v468
    %v525 = vunpack.c.l.b16 %v469
    %v526 = vunpack.c.h.b16 %v469
    %v527 = vunpack.c.l.b16 %v470
    %v528 = vunpack.c.h.b16 %v470
    %v529 = vunpack.c.l.b16 %v471
    %v530 = vunpack.c.h.b16 %v471
    %v531 = vunpack.c.l.b16 %v472
    %v532 = vunpack.c.h.b16 %v472
    %v533 = vunpack.c.l.b16 %v473
    %v534 = vunpack.c.h.b16 %v473
    %v535 = vpack.c.b16 %v505, %v503
    %v536 = vpack.c.b16 %v506, %v504
    %v537 = vpack.c.b16 %v509, %v507
    %v538 = vpack.c.b16 %v510, %v508
    %v539 = vpack.c.b16 %v513, %v511
    %v540 = vpack.c.b16 %v514, %v512
    %v541 = vpack.c.b16 %v517, %v515
    %v542 = vpack.c.b16 %v518, %v516
    %v543 = vpack.c.b16 %v521, %v519
    %v544 = vpack.c.b16 %v522, %v520
    %v545 = vpack.c.b16 %v525, %v523
    %v546 = vpack.c.b16 %v526, %v524
    %v547 = vpack.c.b16 %v529, %v527
    %v548 = vpack.c.b16 %v530, %v528
    %v549 = vpack.c.b16 %v533, %v531
    %v550 = vpack.c.b16 %v534, %v532
    %567 = vmatprep.subr.bf16.mxu0 %v536
    %568 = vmatpush1.bf16.msra.mxu0 %v535
    %569 = vmatprep.subr.bf16.mxu0 %v538
    %570 = vmatpush1.bf16.msra.mxu0 %v537
    %571 = vmatprep.subr.bf16.mxu0 %v540
    %572 = vmatpush1.bf16.msra.mxu0 %v539
    %573 = vmatprep.subr.bf16.mxu0 %v542
    %574 = vmatpush1.bf16.msra.mxu0 %v541
    %575 = vmatprep.subr.bf16.mxu0 %v544
    %576 = vmatpush1.bf16.msra.mxu0 %v543
    %577 = vmatprep.subr.bf16.mxu0 %v546
    %578 = vmatpush1.bf16.msra.mxu0 %v545
    %579 = vmatprep.subr.bf16.mxu0 %v548
    %580 = vmatpush1.bf16.msra.mxu0 %v547
    %581 = vmatprep.subr.bf16.mxu0 %v550
    %582 = vmatpush1.bf16.msra.mxu0 %v549
    %583 = vmatprep.subr.bf16.mxu0 0
    %584 = vmatpush1.bf16.msra.mxu0 0
    %585 = vmatprep.subr.bf16.mxu0 0
    %586 = vmatpush1.bf16.msra.mxu0 0
    %587 = vmatprep.subr.bf16.mxu0 0
    %588 = vmatpush1.bf16.msra.mxu0 0
    %589 = vmatprep.subr.bf16.mxu0 0
    %590 = vmatpush1.bf16.msra.mxu0 0
    %591 = vmatprep.subr.bf16.mxu0 0
    %592 = vmatpush1.bf16.msra.mxu0 0
    %593 = vmatprep.subr.bf16.mxu0 0
    %594 = vmatpush1.bf16.msra.mxu0 0
    %595 = vmatprep.subr.bf16.mxu0 0
    %596 = vmatpush1.bf16.msra.mxu0 0
    %597 = vmatprep.subr.bf16.mxu0 0
    %598 = vmatpush1.bf16.msra.mxu0 0
    %599 = vmatprep.mubr.bf16.mxu0 0
    %600 = vmatmul.mubr.bf16.gmra.mrb[0].mxu0 %v449
    %v601 = vpop.f32.mrb[0].mxu0
    %v602 = vadd.f32 %v480, %v601
    %v603 = vpop.f32.mrb[0].mxu0
    %v604 = vadd.f32 %v484, %v603
    %v605 = vpop.f32.mrb[0].mxu0
    %v606 = vadd.f32 %v480, %v605
    %v607 = vpop.f32.mrb[0].mxu0
    %v608 = vadd.f32 %v484, %v607
    %609 = vmatprep.mubr.bf16.mxu0 0
    %610 = vmatmul.mubr.bf16.gmra.mrb[0].mxu0 %v450
    %v611 = vpop.f32.mrb[0].mxu0
    %v612 = vadd.f32 %v480, %v611
    %v613 = vpop.f32.mrb[0].mxu0
    %v614 = vadd.f32 %v484, %v613
    %v615 = vpop.f32.mrb[0].mxu0
    %v616 = vadd.f32 %v480, %v615
    %v617 = vpop.f32.mrb[0].mxu0
    %v618 = vadd.f32 %v484, %v617
    %619 = vmatprep.mubr.bf16.mxu0 0
    %620 = vmatmul.mubr.bf16.gmra.mrb[0].mxu0 %v451
    %v621 = vpop.f32.mrb[0].mxu0
    %v622 = vadd.f32 %v480, %v621
    %v623 = vpop.f32.mrb[0].mxu0
    %v624 = vadd.f32 %v484, %v623
    %v625 = vpop.f32.mrb[0].mxu0
    %v626 = vadd.f32 %v480, %v625
    %v627 = vpop.f32.mrb[0].mxu0
    %v628 = vadd.f32 %v484, %v627
    %629 = vmatprep.mubr.bf16.mxu0 0
    %630 = vmatmul.mubr.bf16.gmra.mrb[0].mxu0 %v452
    %v631 = vpop.f32.mrb[0].mxu0
    %v632 = vadd.f32 %v480, %v631
    %v633 = vpop.f32.mrb[0].mxu0
    %v634 = vadd.f32 %v484, %v633
    %v635 = vpop.f32.mrb[0].mxu0
    %v636 = vadd.f32 %v480, %v635
    %v637 = vpop.f32.mrb[0].mxu0
    %v638 = vadd.f32 %v484, %v637
    %639 = vmatprep.mubr.bf16.mxu0 0
    %640 = vmatmul.mubr.bf16.gmra.mrb[0].mxu0 %v453
    %v641 = vpop.f32.mrb[0].mxu0
    %v642 = vadd.f32 %v480, %v641
    %v643 = vpop.f32.mrb[0].mxu0
    %v644 = vadd.f32 %v484, %v643
    %v645 = vpop.f32.mrb[0].mxu0
    %v646 = vadd.f32 %v480, %v645
    %v647 = vpop.f32.mrb[0].mxu0
    %v648 = vadd.f32 %v484, %v647
    %649 = vmatprep.mubr.bf16.mxu0 0
    %650 = vmatmul.mubr.bf16.gmra.mrb[0].mxu0 %v454
    %v651 = vpop.f32.mrb[0].mxu0
    %v652 = vadd.f32 %v480, %v651
    %v653 = vpop.f32.mrb[0].mxu0
    %v654 = vadd.f32 %v484, %v653
    %v655 = vpop.f32.mrb[0].mxu0
    %v656 = vadd.f32 %v480, %v655
    %v657 = vpop.f32.mrb[0].mxu0
    %v658 = vadd.f32 %v484, %v657
    %659 = vmatprep.mubr.bf16.mxu0 0
    %660 = vmatmul.mubr.bf16.gmra.mrb[0].mxu0 %v455
    %v661 = vpop.f32.mrb[0].mxu0
    %v662 = vadd.f32 %v480, %v661
    %v663 = vpop.f32.mrb[0].mxu0
    %v664 = vadd.f32 %v484, %v663
    %v665 = vpop.f32.mrb[0].mxu0
    %v666 = vadd.f32 %v480, %v665
    %v667 = vpop.f32.mrb[0].mxu0
    %v668 = vadd.f32 %v484, %v667
    %669 = vmatprep.mubr.bf16.mxu0 0
    %670 = vmatmul.mubr.bf16.gmra.mrb[0].mxu0 %v456
    %v671 = vpop.f32.mrb[0].mxu0
    %v672 = vadd.f32 %v480, %v671
    %v673 = vpop.f32.mrb[0].mxu0
    %v674 = vadd.f32 %v484, %v673
    %v675 = vpop.f32.mrb[0].mxu0
    %v676 = vadd.f32 %v480, %v675
    %v677 = vpop.f32.mrb[0].mxu0
    %v678 = vadd.f32 %v484, %v677
    %679 = vdwg.mxu0
    %v680 = vxor.u32 %v602, 2147483648
    %v681 = vxor.u32 %v606, 2147483648
    %v682 = vxor.u32 %v612, 2147483648
    %v683 = vxor.u32 %v616, 2147483648
    %v684 = vxor.u32 %v622, 2147483648
    %v685 = vxor.u32 %v626, 2147483648
    %v686 = vxor.u32 %v632, 2147483648
    %v687 = vxor.u32 %v636, 2147483648
    %v688 = vxor.u32 %v642, 2147483648
    %v689 = vxor.u32 %v646, 2147483648
    %v690 = vxor.u32 %v652, 2147483648
    %v691 = vxor.u32 %v656, 2147483648
    %v692 = vxor.u32 %v662, 2147483648
    %v693 = vxor.u32 %v666, 2147483648
    %v694 = vxor.u32 %v672, 2147483648
    %v695 = vxor.u32 %v676, 2147483648
    %v696 = vmul.f32 %v680, 1.442695
    %v697 = vpow.pop %v696
    %v698 = vmul.f32 %v681, 1.442695
    %v699 = vpow.pop %v698
    %v700 = vmul.f32 %v682, 1.442695
    %v701 = vpow.pop %v700
    %v702 = vmul.f32 %v683, 1.442695
    %v703 = vpow.pop %v702
    %v704 = vmul.f32 %v684, 1.442695
    %v705 = vpow.pop %v704
    %v706 = vmul.f32 %v685, 1.442695
    %v707 = vpow.pop %v706
    %v708 = vmul.f32 %v686, 1.442695
    %v709 = vpow.pop %v708
    %v710 = vmul.f32 %v687, 1.442695
    %v711 = vpow.pop %v710
    %v712 = vmul.f32 %v688, 1.442695
    %v713 = vpow.pop %v712
    %v714 = vmul.f32 %v689, 1.442695
    %v715 = vpow.pop %v714
    %v716 = vmul.f32 %v690, 1.442695
    %v717 = vpow.pop %v716
    %v718 = vmul.f32 %v691, 1.442695
    %v719 = vpow.pop %v718
    %v720 = vmul.f32 %v692, 1.442695
    %v721 = vpow.pop %v720
    %v722 = vmul.f32 %v693, 1.442695
    %v723 = vpow.pop %v722
    %v724 = vmul.f32 %v694, 1.442695
    %v725 = vpow.pop %v724
    %v726 = vmul.f32 %v695, 1.442695
    %v727 = vpow.pop %v726
    %v728 = vadd.f32 %v697, 1.0
    %v729 = vadd.f32 %v699, 1.0
    %v730 = vadd.f32 %v701, 1.0
    %v731 = vadd.f32 %v703, 1.0
    %v732 = vadd.f32 %v705, 1.0
    %v733 = vadd.f32 %v707, 1.0
    %v734 = vadd.f32 %v709, 1.0
    %v735 = vadd.f32 %v711, 1.0
    %v736 = vadd.f32 %v713, 1.0
    %v737 = vadd.f32 %v715, 1.0
    %v738 = vadd.f32 %v717, 1.0
    %v739 = vadd.f32 %v719, 1.0
    %v740 = vadd.f32 %v721, 1.0
    %v741 = vadd.f32 %v723, 1.0
    %v742 = vadd.f32 %v725, 1.0
    %v743 = vadd.f32 %v727, 1.0
    %v744 = vrcp.pop %v728
    %v745 = vmul.f32 1.0, %v744
    %v746 = vrcp.pop %v729
    %v747 = vmul.f32 1.0, %v746
    %v748 = vrcp.pop %v730
    %v749 = vmul.f32 1.0, %v748
    %v750 = vrcp.pop %v731
    %v751 = vmul.f32 1.0, %v750
    %v752 = vrcp.pop %v732
    %v753 = vmul.f32 1.0, %v752
    %v754 = vrcp.pop %v733
    %v755 = vmul.f32 1.0, %v754
    %v756 = vrcp.pop %v734
    %v757 = vmul.f32 1.0, %v756
    %v758 = vrcp.pop %v735
    %v759 = vmul.f32 1.0, %v758
    %v760 = vrcp.pop %v736
    %v761 = vmul.f32 1.0, %v760
    %v762 = vrcp.pop %v737
    %v763 = vmul.f32 1.0, %v762
    %v764 = vrcp.pop %v738
    %v765 = vmul.f32 1.0, %v764
    %v766 = vrcp.pop %v739
    %v767 = vmul.f32 1.0, %v766
    %v768 = vrcp.pop %v740
    %v769 = vmul.f32 1.0, %v768
    %v770 = vrcp.pop %v741
    %v771 = vmul.f32 1.0, %v770
    %v772 = vrcp.pop %v742
    %v773 = vmul.f32 1.0, %v772
    %v774 = vrcp.pop %v743
    %v775 = vmul.f32 1.0, %v774
    %v776 = vmax.f32 %v604, 0.0
    %v777 = vmax.f32 %v608, 0.0
    %v778 = vmax.f32 %v614, 0.0
    %v779 = vmax.f32 %v618, 0.0
    %v780 = vmax.f32 %v624, 0.0
    %v781 = vmax.f32 %v628, 0.0
    %v782 = vmax.f32 %v634, 0.0
    %v783 = vmax.f32 %v638, 0.0
    %v784 = vmax.f32 %v644, 0.0
    %v785 = vmax.f32 %v648, 0.0
    %v786 = vmax.f32 %v654, 0.0
    %v787 = vmax.f32 %v658, 0.0
    %v788 = vmax.f32 %v664, 0.0
    %v789 = vmax.f32 %v668, 0.0
    %v790 = vmax.f32 %v674, 0.0
    %v791 = vmax.f32 %v678, 0.0
    %v792 = vsub.f32 %v776, %v433
    %v793 = vsub.f32 %v777, %v434
    %v794 = vsub.f32 %v778, %v435
    %v795 = vsub.f32 %v779, %v436
    %v796 = vsub.f32 %v780, %v437
    %v797 = vsub.f32 %v781, %v438
    %v798 = vsub.f32 %v782, %v439
    %v799 = vsub.f32 %v783, %v440
    %v800 = vsub.f32 %v784, %v441
    %v801 = vsub.f32 %v785, %v442
    %v802 = vsub.f32 %v786, %v443
    %v803 = vsub.f32 %v787, %v444
    %v804 = vsub.f32 %v788, %v445
    %v805 = vsub.f32 %v789, %v446
    %v806 = vsub.f32 %v790, %v447
    %v807 = vsub.f32 %v791, %v448
    %v808 = vmul.f32 %v745, %v792
    %v809 = vmul.f32 %v747, %v793
    %v810 = vmul.f32 %v749, %v794
    %v811 = vmul.f32 %v751, %v795
    %v812 = vmul.f32 %v753, %v796
    %v813 = vmul.f32 %v755, %v797
    %v814 = vmul.f32 %v757, %v798
    %v815 = vmul.f32 %v759, %v799
    %v816 = vmul.f32 %v761, %v800
    %v817 = vmul.f32 %v763, %v801
    %v818 = vmul.f32 %v765, %v802
    %v819 = vmul.f32 %v767, %v803
    %v820 = vmul.f32 %v769, %v804
    %v821 = vmul.f32 %v771, %v805
    %v822 = vmul.f32 %v773, %v806
    %v823 = vmul.f32 %v775, %v807
    %v824 = vadd.f32 %v433, %v808
    %v825 = vadd.f32 %v434, %v809
    %v826 = vadd.f32 %v435, %v810
    %v827 = vadd.f32 %v436, %v811
    %v828 = vadd.f32 %v437, %v812
    %v829 = vadd.f32 %v438, %v813
    %v830 = vadd.f32 %v439, %v814
    %v831 = vadd.f32 %v440, %v815
    %v832 = vadd.f32 %v441, %v816
    %v833 = vadd.f32 %v442, %v817
    %v834 = vadd.f32 %v443, %v818
    %v835 = vadd.f32 %v444, %v819
    %v836 = vadd.f32 %v445, %v820
    %v837 = vadd.f32 %v446, %v821
    %v838 = vadd.f32 %v447, %v822
    %v839 = vadd.f32 %v448, %v823
    %840 = vst [vmem:[#allocation7] sm:$0xff] %v824
    %841 = vst [vmem:[#allocation7 + $0x8] sm:$0xff] %v825
    %842 = vst [vmem:[#allocation7 + $0x10] sm:$0xff] %v826
    %843 = vst [vmem:[#allocation7 + $0x18] sm:$0xff] %v827
    %844 = vst [vmem:[#allocation7 + $0x20] sm:$0xff] %v828
    %845 = vst [vmem:[#allocation7 + $0x28] sm:$0xff] %v829
    %846 = vst [vmem:[#allocation7 + $0x30] sm:$0xff] %v830
    %847 = vst [vmem:[#allocation7 + $0x38] sm:$0xff] %v831
    %848 = vst [vmem:[#allocation7 + $0x40] sm:$0xff] %v832
    %849 = vst [vmem:[#allocation7 + $0x48] sm:$0xff] %v833
    %850 = vst [vmem:[#allocation7 + $0x50] sm:$0xff] %v834
    %851 = vst [vmem:[#allocation7 + $0x58] sm:$0xff] %v835
    %852 = vst [vmem:[#allocation7 + $0x60] sm:$0xff] %v836
    %853 = vst [vmem:[#allocation7 + $0x68] sm:$0xff] %v837
    %854 = vst [vmem:[#allocation7 + $0x70] sm:$0xff] %v838
    %855 = vst [vmem:[#allocation7 + $0x78] sm:$0xff] %v839
    // Predicated region
    $region22: #{tpu_custom_call.1} parent=1 // pred_check
      _
    $region23: #{tpu_custom_call.1} parent=1 // pred_check_branch
      %857 = sbr.rel (0) target = $region25
    $region24: #{tpu_custom_call.1} parent=1 // pred_region
      %s859 = ssub.s32 2048, 256
      %860 = vsyncadd [#allocation4], %s859
      %s861 = sshll.u32 [#allocation7], 4
      %s862 = int_to_ptr.vmem [resolvable:$true] %s861
      %867 = dma.vmem_to_hbm [thread:$0]  %s862, 256, %s3, [#allocation4], 128, 128, 8
    $region25: #{tpu_custom_call.1} parent=1 // pred_fallthru
      _
    // Predicated region
    $region26: #{tpu_custom_call.1} parent=1 // pred_check
      _
    $region27: #{tpu_custom_call.1} parent=1 // pred_check_branch
      %869 = sbr.rel (0) target = $region29
    $region28: #{tpu_custom_call.1} parent=1 // pred_region
      %870 = dma.done [#allocation4], 2048
    $region29: #{tpu_custom_call.1} parent=1 // pred_fallthru
      _
    %871 = vsyncpa [#allocation3], 1
    %872 = vsyncpa [#allocation6], 1
    %873 = vsyncpa [#allocation4], 1

</llo_original>
